<compile_context>
chip_gen: v6e
topology: v6e:2x2x1
jax: 0.10.0
libtpu: 0.0.40
codegen_flags: <defaults>
</compile_context>

<pallas_src>
import functools

import jax
import jax.numpy as jnp
from jax import lax
from jax.experimental import pallas as pl
from jax.experimental.pallas import tpu as pltpu

# Contract dim 1 of x (F_in) with dim 1 of W ([F_out, F_in] PyTorch layout).
_DN = (((1,), (1,)), ((), ()))


# --------------------------------------------------------------------------
# Kernels
# --------------------------------------------------------------------------
def _noisy_train_kernel(x_ref, mu_w_ref, sig_w_ref, mu_b_ref, sig_b_ref,
                        eps_in_ref, eps_out_ref, o_ref, mu_acc, ns_acc):
    k = pl.program_id(1)

    @pl.when(k == 0)
    def _():
        mu_acc[...] = jnp.zeros_like(mu_acc)
        ns_acc[...] = jnp.zeros_like(ns_acc)

    x = x_ref[...]                                       # (B, tk)
    eps_in = eps_in_ref[...]                             # (1, tk)

    # Both contractions on the MXU, f32 accumulation.
    mu_acc[...] += lax.dot_general(x, mu_w_ref[...], _DN,
                                   preferred_element_type=jnp.float32)
    ns_acc[...] += lax.dot_general(x * eps_in, sig_w_ref[...], _DN,
                                   preferred_element_type=jnp.float32)

    @pl.when(k == pl.num_programs(1) - 1)
    def _():
        eps_out = eps_out_ref[...]                       # (1, tn)
        b = mu_b_ref[...] + sig_b_ref[...] * eps_out     # (1, tn)
        o_ref[...] = (mu_acc[...] + ns_acc[...] * eps_out + b).astype(o_ref.dtype)


def _eval_kernel(x_ref, mu_w_ref, mu_b_ref, o_ref, acc_ref):
    k = pl.program_id(1)

    @pl.when(k == 0)
    def _():
        acc_ref[...] = jnp.zeros_like(acc_ref)

    acc_ref[...] += lax.dot_general(x_ref[...], mu_w_ref[...], _DN,
                                    preferred_element_type=jnp.float32)

    @pl.when(k == pl.num_programs(1) - 1)
    def _():
        o_ref[...] = (acc_ref[...] + mu_b_ref[...]).astype(o_ref.dtype)


# --------------------------------------------------------------------------
# Tiling helpers
# --------------------------------------------------------------------------
def _round_up(x, m):
    return ((x + m - 1) // m) * m


def _tile_and_pad(dim, cap):
    """Return (tile, padded_dim) with tile <= max(cap, 128) always bounded.

    Preference order: full extent (dim <= cap) > largest 128-multiple divisor
    <= cap > zero-pad dim to a 128 multiple and tile that.  Never returns a
    block larger than the cap for oversized dims (no VMEM-OOM cliff).
    """
    if dim <= cap:
        return dim, dim
    start = cap - cap % 128
    for t in range(start, 127, -128):
        if dim % t == 0:
            return t, dim
    pad = _round_up(dim, 128)
    for t in range(start, 127, -128):
        if pad % t == 0:
            return t, pad
    return 128, pad


def _vmem_limit_bytes():
    """~75% of the detected per-core VMEM; conservative 48 MiB fallback."""
    try:
        cap = pltpu.get_tpu_info().vmem_capacity_bytes
    except Exception:
        cap = 64 << 20                      # v7x-sized fallback
    return int(cap) * 3 // 4                # 96 MiB v5e/v6e, 48 MiB v7x


def _shrink_to_budget(batch, tn, tk, n_weight_streams, w_itemsize, x_itemsize,
                      budget):
    """Halve tiles (keeping 128-alignment and divisibility) until the
    double-buffered working set fits the VMEM budget.  No-op for the default
    caps; protects against caller-supplied oversized tiles."""
    def footprint(tn_, tk_):
        w = 2 * n_weight_streams * tn_ * tk_ * w_itemsize     # dbl-buffered W
        xs = 2 * batch * tk_ * x_itemsize                     # dbl-buffered x
        acc = n_weight_streams * batch * tn_ * 4              # accumulators
        out = 2 * batch * tn_ * x_itemsize
        return w + xs + acc + out + (1 << 20)                 # + small rows

    while footprint(tn, tk) > budget and tk % 256 == 0 and tk > 256:
        tk //= 2
    while footprint(tn, tk) > budget and tn % 256 == 0 and tn > 256:
        tn //= 2
    return tn, tk


# --------------------------------------------------------------------------
# Wrapper
# --------------------------------------------------------------------------
def noisy_linear(x, mu_weight, sigma_weight, mu_bias, sigma_bias,
                 u_in, u_out, *, training=True, tile_out=512, tile_in=2048):
    """x: [B, F_in]; mu_weight/sigma_weight: [F_out, F_in] (PyTorch layout).

    u_in / u_out are the raw uniform draws fed to get_noise_tensor.
    Note: B not a multiple of 8 gets sublane padding (correct, slightly
    wasteful).  bf16 weights are accepted (f32 accumulation is kept).
    """
    B, f_in = x.shape
    f_out = mu_weight.shape[0]

    tn, f_out_p = _tile_and_pad(f_out, tile_out)   # F_out tile (output lanes)
    tk, f_in_p = _tile_and_pad(f_in, tile_in)      # F_in tile (reduction)

    vmem_limit = _vmem_limit_bytes()
    n_w = 2 if training else 1
    tn, tk = _shrink_to_budget(B, tn, tk, n_w,
                               jnp.dtype(mu_weight.dtype).itemsize,
                               jnp.dtype(x.dtype).itemsize,
                               int(vmem_limit * 0.7))
    grid = (f_out_p // tn, f_in_p // tk)

    # --- optional zero-padding (exact; only for dims with no good divisor) ---
    pad_in = f_in_p - f_in
    pad_out = f_out_p - f_out
    if pad_in:
        x = jnp.pad(x, ((0, 0), (0, pad_in)))
        mu_weight = jnp.pad(mu_weight, ((0, 0), (0, pad_in)))
    if pad_out:
        mu_weight = jnp.pad(mu_weight, ((0, pad_out), (0, 0)))
        mu_bias = jnp.pad(mu_bias, (0, pad_out))

    mu_b = mu_bias.reshape(1, f_out_p)

    # --- BlockSpecs (reduction axis k is innermost / "arbitrary") -----------
    x_spec = pl.BlockSpec((B, tk), lambda j, k: (0, k))
    w_spec = pl.BlockSpec((tn, tk), lambda j, k: (j, k))
    row_out_spec = pl.BlockSpec((1, tn), lambda j, k: (0, j))
    row_in_spec = pl.BlockSpec((1, tk), lambda j, k: (0, k))
    out_spec = pl.BlockSpec((B, tn), lambda j, k: (0, j))

    compiler_params = pltpu.CompilerParams(
        dimension_semantics=("parallel", "arbitrary"),
        vmem_limit_bytes=vmem_limit)
    out_shape = jax.ShapeDtypeStruct((B, f_out_p), x.dtype)

    w_bytes = jnp.dtype(mu_weight.dtype).itemsize
    x_bytes = jnp.dtype(x.dtype).itemsize
    nj = grid[0]

    if training:
        if pad_in:
            sigma_weight = jnp.pad(sigma_weight, ((0, 0), (0, pad_in)))
            u_in = jnp.pad(u_in, (0, pad_in))
        if pad_out:
            sigma_weight = jnp.pad(sigma_weight, ((0, pad_out), (0, 0)))
            sigma_bias = jnp.pad(sigma_bias, (0, pad_out))
            u_out = jnp.pad(u_out, (0, pad_out))

        # get_noise_tensor transform hoisted out of the kernel (tiny 1-D ops).
        eps_in = (jnp.sign(u_in) * jnp.sqrt(jnp.abs(u_in))).reshape(1, f_in_p)
        eps_out = (jnp.sign(u_out) * jnp.sqrt(jnp.abs(u_out))).reshape(1, f_out_p)
        sig_b = sigma_bias.reshape(1, f_out_p)

        cost = pl.CostEstimate(
            flops=4 * B * f_in_p * f_out_p + 4 * B * f_out_p,
            transcendentals=0,
            bytes_accessed=(2 * f_out_p * f_in_p * w_bytes          # mu_W + sigma_W once
                            + nj * B * f_in_p * x_bytes             # x re-read per j tile
                            + B * f_out_p * x_bytes                 # output
                            + 4 * f_out_p * 4 + f_in_p * 4))        # vectors

        out = pl.pallas_call(
            _noisy_train_kernel,
            out_shape=out_shape,
            grid_spec=pltpu.PrefetchScalarGridSpec(
                num_scalar_prefetch=0, grid=grid,
                in_specs=[x_spec, w_spec, w_spec, row_out_spec, row_out_spec,
                          row_in_spec, row_out_spec],
                out_specs=out_spec,
                scratch_shapes=[pltpu.VMEM((B, tn), jnp.float32),
                                pltpu.VMEM((B, tn), jnp.float32)]),
            compiler_params=compiler_params,
            cost_estimate=cost,
        )(x, mu_weight, sigma_weight, mu_b, sig_b, eps_in, eps_out)
    else:
        # Eval: sigma / noise inputs are never passed, so they are never DMA'd.
        cost = pl.CostEstimate(
            flops=2 * B * f_in_p * f_out_p + 2 * B * f_out_p,
            transcendentals=0,
            bytes_accessed=(f_out_p * f_in_p * w_bytes
                            + nj * B * f_in_p * x_bytes
                            + B * f_out_p * x_bytes + f_out_p * 4))

        out = pl.pallas_call(
            _eval_kernel,
            out_shape=out_shape,
            grid_spec=pltpu.PrefetchScalarGridSpec(
                num_scalar_prefetch=0, grid=grid,
                in_specs=[x_spec, w_spec, row_out_spec],
                out_specs=out_spec,
                scratch_shapes=[pltpu.VMEM((B, tn), jnp.float32)]),
            compiler_params=compiler_params,
            cost_estimate=cost,
        )(x, mu_weight, mu_b)

    if pad_out:
        out = out[:, :f_out]
    return out


# --------------------------------------------------------------------------
# Reference + self-test
# --------------------------------------------------------------------------
def _reference(x, mu_w, sig_w, mu_b, sig_b, u_in, u_out, training):
    if not training:
        return x @ mu_w.T + mu_b
    eps_in = jnp.sign(u_in) * jnp.sqrt(jnp.abs(u_in))
    eps_out = jnp.sign(u_out) * jnp.sqrt(jnp.abs(u_out))
    w = mu_w + sig_w * jnp.outer(eps_out, eps_in)
    b = mu_b + sig_b * eps_out
    return x @ w.T + b


if __name__ == "__main__":
    # Deterministic synthetic parameters (shapes from __init__):
    #   mu_weight/sigma_weight: (out, in); mu_bias/sigma_bias: (out,)
    #   epsilon_input: (in,);  epsilon_output: (out,)
    batch = 8
    input_features = 256
    output_features = 256
    sigma = 0.5
    # TODO(synk): `bound` / sample_noise / parameter_initialization are defined
    # only in concrete subclasses; the factorized-noise convention is used here.
    bound = input_features ** (-0.5)

    key = jax.random.PRNGKey(0)
    kx, kmw, kmb, kui, kuo = jax.random.split(key, 5)

    x = jax.random.normal(kx, (batch, input_features), dtype=jnp.float32)
    mu_weight = jax.random.uniform(
        kmw, (output_features, input_features), minval=-bound, maxval=bound,
        dtype=jnp.float32)
    sigma_weight = jnp.full((output_features, input_features),
                            sigma * bound, dtype=jnp.float32)
    mu_bias = jax.random.uniform(
        kmb, (output_features,), minval=-bound, maxval=bound, dtype=jnp.float32)
    sigma_bias = jnp.full((output_features,), sigma * bound, dtype=jnp.float32)
    # Raw uniform draws feeding get_noise_tensor (transform done in wrapper).
    u_in = jax.random.uniform(kui, (input_features,), minval=-bound,
                              maxval=bound, dtype=jnp.float32)
    u_out = jax.random.uniform(kuo, (output_features,), minval=-bound,
                               maxval=bound, dtype=jnp.float32)

    ref_train = _reference(x, mu_weight, sigma_weight, mu_bias, sigma_bias,
                           u_in, u_out, training=True)
    ref_eval = _reference(x, mu_weight, sigma_weight, mu_bias, sigma_bias,
                          u_in, u_out, training=False)

    # 1) Small tiles so the multi-step reduction / parallel grid path and the
    #    pl.when init/finalize branches are exercised (grid = (2, 2)).
    run_small = functools.partial(noisy_linear, tile_out=128, tile_in=128)
    y_train = run_small(x, mu_weight, sigma_weight, mu_bias, sigma_bias,
                        u_in, u_out, training=True)
    y_eval = run_small(x, mu_weight, sigma_weight, mu_bias, sigma_bias,
                       u_in, u_out, training=False)

    # 2) Production defaults (large tiles; full-extent single-step path here).
    y_train_d = noisy_linear(x, mu_weight, sigma_weight, mu_bias, sigma_bias,
                             u_in, u_out, training=True)
    y_eval_d = noisy_linear(x, mu_weight, sigma_weight, mu_bias, sigma_bias,
                            u_in, u_out, training=False)

    jax.block_until_ready((y_train, y_eval, y_train_d, y_eval_d))

    assert jnp.allclose(y_train, ref_train, atol=1e-4, rtol=1e-4)
    assert jnp.allclose(y_eval, ref_eval, atol=1e-4, rtol=1e-4)
    assert jnp.allclose(y_train_d, ref_train, atol=1e-4, rtol=1e-4)
    assert jnp.allclose(y_eval_d, ref_eval, atol=1e-4, rtol=1e-4)

    print("KERNEL_OK")
</pallas_src>

<mosaic_0001>
module attributes {stable_mosaic.version = 11 : i64} {
  func.func @_noisy_train_kernel(%arg0: i32, %arg1: i32, %arg2: memref<8x128xf32, #tpu.memory_space<vmem>>, %arg3: memref<128x128xf32, #tpu.memory_space<vmem>>, %arg4: memref<128x128xf32, #tpu.memory_space<vmem>>, %arg5: memref<1x128xf32, #tpu.memory_space<vmem>>, %arg6: memref<1x128xf32, #tpu.memory_space<vmem>>, %arg7: memref<1x128xf32, #tpu.memory_space<vmem>>, %arg8: memref<1x128xf32, #tpu.memory_space<vmem>>, %arg9: memref<8x128xf32, #tpu.memory_space<vmem>>, %arg10: memref<8x128xf32, #tpu.memory_space<vmem>>, %arg11: memref<8x128xf32, #tpu.memory_space<vmem>>) attributes {dimension_semantics = [#tpu.dimension_semantics<parallel>, #tpu.dimension_semantics<arbitrary>], iteration_bounds = array<i64: 2, 2>, scalar_prefetch = 0 : i64, scratch_operands = 2 : i64, tpu.core_type = #tpu.core_type<tc>, window_params = [{transform_indices = @transform_0, window_bounds = array<i64: 8, 128>}, {transform_indices = @transform_1, window_bounds = array<i64: 128, 128>}, {transform_indices = @transform_2, window_bounds = array<i64: 128, 128>}, {transform_indices = @transform_3, window_bounds = array<i64: 1, 128>}, {transform_indices = @transform_4, window_bounds = array<i64: 1, 128>}, {transform_indices = @transform_5, window_bounds = array<i64: 1, 128>}, {transform_indices = @transform_6, window_bounds = array<i64: 1, 128>}, {transform_indices = @transform_7, window_bounds = array<i64: 8, 128>}]} {
    %c0_i32 = arith.constant 0 : i32
    %0 = arith.cmpi eq, %arg1, %c0_i32 : i32
    %1 = arith.extui %0 : i1 to i32
    %c0_i32_0 = arith.constant 0 : i32
    %2 = arith.cmpi ne, %1, %c0_i32_0 : i32
    scf.if %2 {
      %cst_18 = arith.constant 0.000000e+00 : f32
      %20 = vector.broadcast %cst_18 : f32 to vector<8x128xf32>
      %c0_19 = arith.constant 0 : index
      %c0_20 = arith.constant 0 : index
      %21 = vector.load %arg10[%c0_19, %c0_20] : memref<8x128xf32, #tpu.memory_space<vmem>>, vector<8x128xf32>
      tpu.vector_store %arg10[%c0_19, %c0_20], %20 {strides = array<i32>} : memref<8x128xf32, #tpu.memory_space<vmem>>, vector<8x128xf32>,
      %cst_21 = arith.constant 0.000000e+00 : f32
      %22 = vector.broadcast %cst_21 : f32 to vector<8x128xf32>
      %c0_22 = arith.constant 0 : index
      %c0_23 = arith.constant 0 : index
      %23 = vector.load %arg11[%c0_22, %c0_23] : memref<8x128xf32, #tpu.memory_space<vmem>>, vector<8x128xf32>
      tpu.vector_store %arg11[%c0_22, %c0_23], %22 {strides = array<i32>} : memref<8x128xf32, #tpu.memory_space<vmem>>, vector<8x128xf32>,
    } else {
    }
    %c0 = arith.constant 0 : index
    %c0_1 = arith.constant 0 : index
    %3 = vector.load %arg2[%c0, %c0_1] : memref<8x128xf32, #tpu.memory_space<vmem>>, vector<8x128xf32>
    %c0_2 = arith.constant 0 : index
    %c0_3 = arith.constant 0 : index
    %4 = vector.load %arg7[%c0_2, %c0_3] : memref<1x128xf32, #tpu.memory_space<vmem>>, vector<1x128xf32>
    %c0_4 = arith.constant 0 : index
    %c0_5 = arith.constant 0 : index
    %5 = vector.load %arg10[%c0_4, %c0_5] : memref<8x128xf32, #tpu.memory_space<vmem>>, vector<8x128xf32>
    %c0_6 = arith.constant 0 : index
    %c0_7 = arith.constant 0 : index
    %6 = vector.load %arg3[%c0_6, %c0_7] : memref<128x128xf32, #tpu.memory_space<vmem>>, vector<128x128xf32>
    %cst = arith.constant dense<0.000000e+00> : vector<8x128xf32>
    %7 = tpu.matmul %3, %6, %cst {dimension_numbers = #tpu.dot_dimension_numbers<[1], [1], [0], [0], [0, 0, 1, 0], [], []>} : vector<8x128xf32>, vector<128x128xf32>, vector<8x128xf32> -> vector<8x128xf32>
    %8 = arith.addf %5, %7 : vector<8x128xf32>
    %c0_8 = arith.constant 0 : index
    %c0_9 = arith.constant 0 : index
    %9 = vector.load %arg10[%c0_8, %c0_9] : memref<8x128xf32, #tpu.memory_space<vmem>>, vector<8x128xf32>
    tpu.vector_store %arg10[%c0_8, %c0_9], %8 {strides = array<i32>} : memref<8x128xf32, #tpu.memory_space<vmem>>, vector<8x128xf32>,
    %c0_10 = arith.constant 0 : index
    %c0_11 = arith.constant 0 : index
    %10 = vector.load %arg11[%c0_10, %c0_11] : memref<8x128xf32, #tpu.memory_space<vmem>>, vector<8x128xf32>
    %11 = vector.broadcast %4 : vector<1x128xf32> to vector<8x128xf32>
    %12 = arith.mulf %3, %11 : vector<8x128xf32>
    %c0_12 = arith.constant 0 : index
    %c0_13 = arith.constant 0 : index
    %13 = vector.load %arg4[%c0_12, %c0_13] : memref<128x128xf32, #tpu.memory_space<vmem>>, vector<128x128xf32>
    %cst_14 = arith.constant dense<0.000000e+00> : vector<8x128xf32>
    %14 = tpu.matmul %12, %13, %cst_14 {dimension_numbers = #tpu.dot_dimension_numbers<[1], [1], [0], [0], [0, 0, 1, 0], [], []>} : vector<8x128xf32>, vector<128x128xf32>, vector<8x128xf32> -> vector<8x128xf32>
    %15 = arith.addf %10, %14 : vector<8x128xf32>
    %c0_15 = arith.constant 0 : index
    %c0_16 = arith.constant 0 : index
    %16 = vector.load %arg11[%c0_15, %c0_16] : memref<8x128xf32, #tpu.memory_space<vmem>>, vector<8x128xf32>
    tpu.vector_store %arg11[%c0_15, %c0_16], %15 {strides = array<i32>} : memref<8x128xf32, #tpu.memory_space<vmem>>, vector<8x128xf32>,
    %c1_i32 = arith.constant 1 : i32
    %17 = arith.cmpi eq, %arg1, %c1_i32 : i32
    %18 = arith.extui %17 : i1 to i32
    %c0_i32_17 = arith.constant 0 : i32
    %19 = arith.cmpi ne, %18, %c0_i32_17 : i32
    scf.if %19 {
      %c0_18 = arith.constant 0 : index
      %c0_19 = arith.constant 0 : index
      %20 = vector.load %arg8[%c0_18, %c0_19] : memref<1x128xf32, #tpu.memory_space<vmem>>, vector<1x128xf32>
      %c0_20 = arith.constant 0 : index
      %c0_21 = arith.constant 0 : index
      %21 = vector.load %arg5[%c0_20, %c0_21] : memref<1x128xf32, #tpu.memory_space<vmem>>, vector<1x128xf32>
      %c0_22 = arith.constant 0 : index
      %c0_23 = arith.constant 0 : index
      %22 = vector.load %arg6[%c0_22, %c0_23] : memref<1x128xf32, #tpu.memory_space<vmem>>, vector<1x128xf32>
      %23 = arith.mulf %22, %20 : vector<1x128xf32>
      %24 = arith.addf %21, %23 : vector<1x128xf32>
      %c0_24 = arith.constant 0 : index
      %c0_25 = arith.constant 0 : index
      %25 = vector.load %arg10[%c0_24, %c0_25] : memref<8x128xf32, #tpu.memory_space<vmem>>, vector<8x128xf32>
      %c0_26 = arith.constant 0 : index
      %c0_27 = arith.constant 0 : index
      %26 = vector.load %arg11[%c0_26, %c0_27] : memref<8x128xf32, #tpu.memory_space<vmem>>, vector<8x128xf32>
      %27 = vector.broadcast %20 : vector<1x128xf32> to vector<8x128xf32>
      %28 = arith.mulf %26, %27 : vector<8x128xf32>
      %29 = arith.addf %25, %28 : vector<8x128xf32>
      %30 = vector.broadcast %24 : vector<1x128xf32> to vector<8x128xf32>
      %31 = arith.addf %29, %30 : vector<8x128xf32>
      %c0_28 = arith.constant 0 : index
      %c0_29 = arith.constant 0 : index
      %32 = vector.load %arg9[%c0_28, %c0_29] : memref<8x128xf32, #tpu.memory_space<vmem>>, vector<8x128xf32>
      tpu.vector_store %arg9[%c0_28, %c0_29], %31 {strides = array<i32>} : memref<8x128xf32, #tpu.memory_space<vmem>>, vector<8x128xf32>,
    } else {
    }
    return
  }
  func.func @transform_0(%arg0: i32, %arg1: i32) -> (i32, i32) {
    %c0_i32 = arith.constant 0 : i32
    %c0_i32_0 = arith.constant 0 : i32
    return %c0_i32, %arg1 : i32, i32
  }
  func.func @transform_1(%arg0: i32, %arg1: i32) -> (i32, i32) {
    %c0_i32 = arith.constant 0 : i32
    return %arg0, %arg1 : i32, i32
  }
  func.func @transform_2(%arg0: i32, %arg1: i32) -> (i32, i32) {
    %c0_i32 = arith.constant 0 : i32
    return %arg0, %arg1 : i32, i32
  }
  func.func @transform_3(%arg0: i32, %arg1: i32) -> (i32, i32) {
    %c0_i32 = arith.constant 0 : i32
    %c0_i32_0 = arith.constant 0 : i32
    return %c0_i32, %arg0 : i32, i32
  }
  func.func @transform_4(%arg0: i32, %arg1: i32) -> (i32, i32) {
    %c0_i32 = arith.constant 0 : i32
    %c0_i32_0 = arith.constant 0 : i32
    return %c0_i32, %arg0 : i32, i32
  }
  func.func @transform_5(%arg0: i32, %arg1: i32) -> (i32, i32) {
    %c0_i32 = arith.constant 0 : i32
    %c0_i32_0 = arith.constant 0 : i32
    return %c0_i32, %arg1 : i32, i32
  }
  func.func @transform_6(%arg0: i32, %arg1: i32) -> (i32, i32) {
    %c0_i32 = arith.constant 0 : i32
    %c0_i32_0 = arith.constant 0 : i32
    return %c0_i32, %arg0 : i32, i32
  }
  func.func @transform_7(%arg0: i32, %arg1: i32) -> (i32, i32) {
    %c0_i32 = arith.constant 0 : i32
    %c0_i32_0 = arith.constant 0 : i32
    return %c0_i32, %arg0 : i32, i32
  }
}

</mosaic_0001>

<llo_original>
// kernel: tpu_custom_call.1
$region0: #{tpu_custom_call.1}
  #allocation0 [shape = 'u32[]', space=smem, size = 0x4, offset = 0x4, fixed_abs, tag = 'smem constant byte address 0x4 - core index']
  #allocation1 [shape = 'u32[144,128]{1,0:T(1,128)}', space=vmem, size = 0x12000, scoped, tag = 'internal scratch']
  #allocation2 [shape = 'f32[8,128]{1,0:T(8,128)}', space=vmem, size = 0x1000, scoped, tag = 'scratch operand']
  #allocation3 [shape = 'f32[8,128]{1,0:T(8,128)}', space=vmem, size = 0x1000, scoped, tag = 'scratch operand']
  %s0 = inlined_call_operand.hbm [shape: f32[8,256], index: 0, kind: input, shape index: {}]
  %s1 = inlined_call_operand.hbm [shape: f32[256,256], index: 1, kind: input, shape index: {}]
  %s2 = inlined_call_operand.hbm [shape: f32[256,256], index: 2, kind: input, shape index: {}]
  %s3 = inlined_call_operand.vmem [shape: f32[1,256], index: 3, kind: input, shape index: {}]
  %s4 = inlined_call_operand.vmem [shape: f32[1,256], index: 4, kind: input, shape index: {}]
  %s5 = inlined_call_operand.vmem [shape: f32[1,256], index: 5, kind: input, shape index: {}]
  %s6 = inlined_call_operand.vmem [shape: f32[1,256], index: 6, kind: input, shape index: {}]
  %s7 = inlined_call_operand.hbm [shape: f32[8,256], index: 7, kind: output, shape index: {}]
  %s8 = sld [smem:[#allocation0]]
  $region81: #{tpu_custom_call.1} parent=0
    _
  %s10 = ssub.s32 1, %s8
  %s11 = scalar_select 0, %s10, %s8
  $region1: #{tpu_custom_call.1} parent=0
    #allocation4 [shape = 'u8[8192]{0}', space=vmem, size = 0x2000, scoped, tag = 'input window, operand 0']
    #allocation5 [shape = 's32[2]{0}', space=sflag, size = 0x8, scoped, tag = 'scoped memory for tpu_custom_call.1']
    #allocation6 [shape = 's32[2]{0}', space=sflag, size = 0x8, scoped, tag = 'scoped memory for tpu_custom_call.1']
    #allocation7 [shape = 'u8[131072]{0}', space=vmem, size = 0x20000, scoped, tag = 'input window, operand 1']
    #allocation8 [shape = 's32[2]{0}', space=sflag, size = 0x8, scoped, tag = 'scoped memory for tpu_custom_call.1']
    #allocation9 [shape = 'u8[131072]{0}', space=vmem, size = 0x20000, scoped, tag = 'input window, operand 2']
    #allocation10 [shape = 'u8[8192]{0}', space=vmem, size = 0x2000, scoped, tag = 'output window, operand 0']
    %12 = vsyncpa [#allocation5], 0
    %s13 = scalar_lea.sflag [#allocation5], 1
    %14 = vsyncpa %s13, 0
    %15 = vsyncpa [#allocation8], 0
    %s16 = scalar_lea.sflag [#allocation8], 1
    %17 = vsyncpa %s16, 0
    %18 = vsyncpa [#allocation6], 0
    %s19 = scalar_lea.sflag [#allocation6], 1
    %20 = vsyncpa %s19, 0
    loop: start=0, step=1, limit=6
    $region2: #{tpu_custom_call.1} parent=1 // loop_pre_header
      _
    $region3: #{tpu_custom_call.1} parent=1 // loop_header
      %s22 = sphi 0, %s26
      %p23 = scmp.ge.s32.totalorder %s22, 6
      %s29 = sphi 0, %s41
      %s30 = sphi 0, %s37
      %s31 = sphi 0, %s29
      %s32 = sphi 0, %s30
      %s33 = sphi 0, %s31
      %s34 = sphi 0, %s32
      %s44 = sphi 0, %s46
      %s47 = sphi 0, %s44
      %s48 = sphi 0, %s47
      %s64 = sphi 0, %s48
      %s72 = sphi 0, %s74
      %s75 = sphi 0, %s72
      %s76 = sphi 0, %s75
      %s92 = sphi 0, %s76
      %s100 = sphi 0, %s102
      %s103 = sphi 0, %s100
      %s104 = sphi 0, %s103
      %s120 = sphi 0, %s104
      %s126 = sphi 0, %s128
      %s129 = sphi 0, %s126
      %s130 = sphi 0, %s129
      %s146 = sphi 0, %s130
      %s152 = sphi 0, %s154
      %s155 = sphi 0, %s152
      %s156 = sphi 0, %s155
      %s172 = sphi 0, %s156
      %s178 = sphi 0, %s180
      %s181 = sphi 0, %s178
      %s182 = sphi 0, %s181
      %s198 = sphi 0, %s182
      %s204 = sphi 0, %s206
      %s207 = sphi 0, %s204
      %s208 = sphi 0, %s207
      %s224 = sphi 0, %s208
      %s230 = sphi 0, %s232
      %s233 = sphi 0, %s230
      %s234 = sphi 0, %s233
      %s250 = sphi 0, %s234
    $region4: #{tpu_custom_call.1} parent=1 // loop_header_branch
      %25 = sbr.rel (%p23) target = $region8
    $region5: #{tpu_custom_call.1} parent=1 // loop_body
      %s27 = ssub.s32 %s22, 1
      %s28 = ssub.s32 %s22, 2
      %s35 = sadd.s32 1, %s30
      %p36 = scmp.ge.s32.totalorder %s35, 2
      %s37 = scalar_select %p36, 0, %s35
      %s38 = sadd.s32 1, %s29
      %s39 = scalar_select %p36, %s38, %s29
      %p40 = scmp.ge.s32.totalorder %s39, 2
      %s41 = scalar_select %p40, 0, %s39
      %s42 = ssub.s32 %s30, %s37
      %p43 = scmp.eq.s32.totalorder %s42, 0
      %s45 = sadd.s32 %s44, 1
      %s46 = scalar_select %p43, %s44, %s45
      %p49 = pneg %p43
      %p50 = scmp.eq.s32.totalorder %s22, 3
      %p51 = por %p49, %p50
      %p52 = scmp.ne.s32.totalorder %s44, %s47
      %p53 = scmp.eq.s32.totalorder %s22, 0
      %p54 = por %p52, %p53
      %p55 = scmp.ne.s32.totalorder %s44, %s47
      %p56 = scmp.eq.s32.totalorder %s27, 3
      %p57 = por %p55, %p56
      %p58 = scmp.ne.s32.totalorder %s47, %s48
      %p59 = scmp.eq.s32.totalorder %s27, 0
      %p60 = por %p58, %p59
      %p61 = scmp.ne.s32.totalorder %s47, %s48
      %p62 = scmp.eq.s32.totalorder %s28, 3
      %p63 = por %p61, %p62
      %p65 = scmp.ne.s32.totalorder %s48, %s64
      %p66 = scmp.eq.s32.totalorder %s28, 0
      %p67 = por %p65, %p66
      %s68 = ssub.s32 %s29, %s41
      %s69 = ssub.s32 %s30, %s37
      %s70 = sor.u32 %s68, %s69
      %p71 = scmp.eq.s32.totalorder %s70, 0
      %s73 = sadd.s32 %s72, 1
      %s74 = scalar_select %p71, %s72, %s73
      %p77 = pneg %p71
      %p78 = scmp.eq.s32.totalorder %s22, 3
      %p79 = por %p77, %p78
      %p80 = scmp.ne.s32.totalorder %s72, %s75
      %p81 = scmp.eq.s32.totalorder %s22, 0
      %p82 = por %p80, %p81
      %p83 = scmp.ne.s32.totalorder %s72, %s75
      %p84 = scmp.eq.s32.totalorder %s27, 3
      %p85 = por %p83, %p84
      %p86 = scmp.ne.s32.totalorder %s75, %s76
      %p87 = scmp.eq.s32.totalorder %s27, 0
      %p88 = por %p86, %p87
      %p89 = scmp.ne.s32.totalorder %s75, %s76
      %p90 = scmp.eq.s32.totalorder %s28, 3
      %p91 = por %p89, %p90
      %p93 = scmp.ne.s32.totalorder %s76, %s92
      %p94 = scmp.eq.s32.totalorder %s28, 0
      %p95 = por %p93, %p94
      %s96 = ssub.s32 %s29, %s41
      %s97 = ssub.s32 %s30, %s37
      %s98 = sor.u32 %s96, %s97
      %p99 = scmp.eq.s32.totalorder %s98, 0
      %s101 = sadd.s32 %s100, 1
      %s102 = scalar_select %p99, %s100, %s101
      %p105 = pneg %p99
      %p106 = scmp.eq.s32.totalorder %s22, 3
      %p107 = por %p105, %p106
      %p108 = scmp.ne.s32.totalorder %s100, %s103
      %p109 = scmp.eq.s32.totalorder %s22, 0
      %p110 = por %p108, %p109
      %p111 = scmp.ne.s32.totalorder %s100, %s103
      %p112 = scmp.eq.s32.totalorder %s27, 3
      %p113 = por %p111, %p112
      %p114 = scmp.ne.s32.totalorder %s103, %s104
      %p115 = scmp.eq.s32.totalorder %s27, 0
      %p116 = por %p114, %p115
      %p117 = scmp.ne.s32.totalorder %s103, %s104
      %p118 = scmp.eq.s32.totalorder %s28, 3
      %p119 = por %p117, %p118
      %p121 = scmp.ne.s32.totalorder %s104, %s120
      %p122 = scmp.eq.s32.totalorder %s28, 0
      %p123 = por %p121, %p122
      %s124 = ssub.s32 %s29, %s41
      %p125 = scmp.eq.s32.totalorder %s124, 0
      %s127 = sadd.s32 %s126, 1
      %s128 = scalar_select %p125, %s126, %s127
      %p131 = pneg %p125
      %p132 = scmp.eq.s32.totalorder %s22, 3
      %p133 = por %p131, %p132
      %p134 = scmp.ne.s32.totalorder %s126, %s129
      %p135 = scmp.eq.s32.totalorder %s22, 0
      %p136 = por %p134, %p135
      %p137 = scmp.ne.s32.totalorder %s126, %s129
      %p138 = scmp.eq.s32.totalorder %s27, 3
      %p139 = por %p137, %p138
      %p140 = scmp.ne.s32.totalorder %s129, %s130
      %p141 = scmp.eq.s32.totalorder %s27, 0
      %p142 = por %p140, %p141
      %p143 = scmp.ne.s32.totalorder %s129, %s130
      %p144 = scmp.eq.s32.totalorder %s28, 3
      %p145 = por %p143, %p144
      %p147 = scmp.ne.s32.totalorder %s130, %s146
      %p148 = scmp.eq.s32.totalorder %s28, 0
      %p149 = por %p147, %p148
      %s150 = ssub.s32 %s29, %s41
      %p151 = scmp.eq.s32.totalorder %s150, 0
      %s153 = sadd.s32 %s152, 1
      %s154 = scalar_select %p151, %s152, %s153
      %p157 = pneg %p151
      %p158 = scmp.eq.s32.totalorder %s22, 3
      %p159 = por %p157, %p158
      %p160 = scmp.ne.s32.totalorder %s152, %s155
      %p161 = scmp.eq.s32.totalorder %s22, 0
      %p162 = por %p160, %p161
      %p163 = scmp.ne.s32.totalorder %s152, %s155
      %p164 = scmp.eq.s32.totalorder %s27, 3
      %p165 = por %p163, %p164
      %p166 = scmp.ne.s32.totalorder %s155, %s156
      %p167 = scmp.eq.s32.totalorder %s27, 0
      %p168 = por %p166, %p167
      %p169 = scmp.ne.s32.totalorder %s155, %s156
      %p170 = scmp.eq.s32.totalorder %s28, 3
      %p171 = por %p169, %p170
      %p173 = scmp.ne.s32.totalorder %s156, %s172
      %p174 = scmp.eq.s32.totalorder %s28, 0
      %p175 = por %p173, %p174
      %s176 = ssub.s32 %s30, %s37
      %p177 = scmp.eq.s32.totalorder %s176, 0
      %s179 = sadd.s32 %s178, 1
      %s180 = scalar_select %p177, %s178, %s179
      %p183 = pneg %p177
      %p184 = scmp.eq.s32.totalorder %s22, 3
      %p185 = por %p183, %p184
      %p186 = scmp.ne.s32.totalorder %s178, %s181
      %p187 = scmp.eq.s32.totalorder %s22, 0
      %p188 = por %p186, %p187
      %p189 = scmp.ne.s32.totalorder %s178, %s181
      %p190 = scmp.eq.s32.totalorder %s27, 3
      %p191 = por %p189, %p190
      %p192 = scmp.ne.s32.totalorder %s181, %s182
      %p193 = scmp.eq.s32.totalorder %s27, 0
      %p194 = por %p192, %p193
      %p195 = scmp.ne.s32.totalorder %s181, %s182
      %p196 = scmp.eq.s32.totalorder %s28, 3
      %p197 = por %p195, %p196
      %p199 = scmp.ne.s32.totalorder %s182, %s198
      %p200 = scmp.eq.s32.totalorder %s28, 0
      %p201 = por %p199, %p200
      %s202 = ssub.s32 %s29, %s41
      %p203 = scmp.eq.s32.totalorder %s202, 0
      %s205 = sadd.s32 %s204, 1
      %s206 = scalar_select %p203, %s204, %s205
      %p209 = pneg %p203
      %p210 = scmp.eq.s32.totalorder %s22, 3
      %p211 = por %p209, %p210
      %p212 = scmp.ne.s32.totalorder %s204, %s207
      %p213 = scmp.eq.s32.totalorder %s22, 0
      %p214 = por %p212, %p213
      %p215 = scmp.ne.s32.totalorder %s204, %s207
      %p216 = scmp.eq.s32.totalorder %s27, 3
      %p217 = por %p215, %p216
      %p218 = scmp.ne.s32.totalorder %s207, %s208
      %p219 = scmp.eq.s32.totalorder %s27, 0
      %p220 = por %p218, %p219
      %p221 = scmp.ne.s32.totalorder %s207, %s208
      %p222 = scmp.eq.s32.totalorder %s28, 3
      %p223 = por %p221, %p222
      %p225 = scmp.ne.s32.totalorder %s208, %s224
      %p226 = scmp.eq.s32.totalorder %s28, 0
      %p227 = por %p225, %p226
      %s228 = ssub.s32 %s29, %s41
      %p229 = scmp.eq.s32.totalorder %s228, 0
      %s231 = sadd.s32 %s230, 1
      %s232 = scalar_select %p229, %s230, %s231
      %p235 = pneg %p229
      %p236 = scmp.eq.s32.totalorder %s22, 3
      %p237 = por %p235, %p236
      %p238 = scmp.ne.s32.totalorder %s230, %s233
      %p239 = scmp.eq.s32.totalorder %s22, 0
      %p240 = por %p238, %p239
      %p241 = scmp.ne.s32.totalorder %s230, %s233
      %p242 = scmp.eq.s32.totalorder %s27, 3
      %p243 = por %p241, %p242
      %p244 = scmp.ne.s32.totalorder %s233, %s234
      %p245 = scmp.eq.s32.totalorder %s27, 0
      %p246 = por %p244, %p245
      %p247 = scmp.ne.s32.totalorder %s233, %s234
      %p248 = scmp.eq.s32.totalorder %s28, 3
      %p249 = por %p247, %p248
      %p251 = scmp.ne.s32.totalorder %s234, %s250
      %p252 = scmp.eq.s32.totalorder %s28, 0
      %p253 = por %p251, %p252
      %p254 = scmp.le.s32.totalorder 1, %s22
      %p255 = scmp.lt.s32.totalorder %s22, 5
      %p256 = pnand %p254, %p255
      %p257 = pneg %p256
      // Predicated region
      $region9: #{tpu_custom_call.1} parent=5 // pred_check
        _
      $region10: #{tpu_custom_call.1} parent=5 // pred_check_branch
        %259 = sbr.rel (%p256) target = $region12
      $region11: #{tpu_custom_call.1} parent=5 // pred_region
        %s260 = ssub.s32 %s22, 1
      $region12: #{tpu_custom_call.1} parent=5 // pred_fallthru
        _
      %p261 = scmp.lt.s32.totalorder %s22, 4
      // Predicated region
      $region13: #{tpu_custom_call.1} parent=5 // pred_check
        %p262 = pneg %p261
      $region14: #{tpu_custom_call.1} parent=5 // pred_check_branch
        %264 = sbr.rel (%p262) target = $region16
      $region15: #{tpu_custom_call.1} parent=5 // pred_region
        // Predicated region
        $region17: #{tpu_custom_call.1} parent=15 // pred_check
          %p265 = pneg %p54
        $region18: #{tpu_custom_call.1} parent=15 // pred_check_branch
          %267 = sbr.rel (%p265) target = $region20
        $region19: #{tpu_custom_call.1} parent=15 // pred_region
          %s268 = sand.u32 %s44, 1
          %s269 = scalar_lea.sflag [#allocation5], %s268
          %s270 = sand.u32 %s44, 1
          %s271 = smul.addr %s270, 8
          %s272 = scalar_lea.vmem [#allocation4], %s271
          %s274 = ssub.s32 128, 128
          %275 = vsyncadd %s269, %s274
          %s276 = smul.addr %s30, 128
          %s277 = scalar_lea.hbm %s0, %s276
          %s279 = sshll.u32 %s272, 4
          %s280 = int_to_ptr.vmem [resolvable:$true] %s279
          %282 = dma.hbm_to_vmem [thread:$0]  %s277, 128, %s280, %s269
        $region20: #{tpu_custom_call.1} parent=15 // pred_fallthru
          _
        // Predicated region
        $region21: #{tpu_custom_call.1} parent=15 // pred_check
          %p283 = pneg %p82
        $region22: #{tpu_custom_call.1} parent=15 // pred_check_branch
          %285 = sbr.rel (%p283) target = $region24
        $region23: #{tpu_custom_call.1} parent=15 // pred_region
          %s286 = sand.u32 %s22, 1
          %s287 = scalar_lea.sflag [#allocation8], %s286
          %s288 = sand.u32 %s72, 1
          %s289 = smul.addr %s288, 128
          %s290 = scalar_lea.vmem [#allocation7], %s289
          %s291 = smul.u32 16, %s29
          %s293 = ssub.s32 2048, 2048
          %294 = vsyncadd %s287, %s293
          %s295 = smul.addr %s291, 2
          %s296 = sadd.s32 %s30, %s295
          %s297 = smul.addr %s296, 128
          %s298 = scalar_lea.hbm %s1, %s297
          %s299 = sshll.u32 %s290, 4
          %s300 = int_to_ptr.vmem [resolvable:$true] %s299
          %305 = dma.hbm_to_vmem [thread:$0]  %s298, 2048, %s300, %s287, 256, 128, 8
        $region24: #{tpu_custom_call.1} parent=15 // pred_fallthru
          _
        // Predicated region
        $region25: #{tpu_custom_call.1} parent=15 // pred_check
          %p306 = pneg %p110
        $region26: #{tpu_custom_call.1} parent=15 // pred_check_branch
          %308 = sbr.rel (%p306) target = $region28
        $region27: #{tpu_custom_call.1} parent=15 // pred_region
          %s309 = sand.u32 %s22, 1
          %s310 = scalar_lea.sflag [#allocation8], %s309
          %s311 = sand.u32 %s100, 1
          %s312 = smul.addr %s311, 128
          %s313 = scalar_lea.vmem [#allocation9], %s312
          %s314 = smul.u32 16, %s29
          %s316 = ssub.s32 2048, 2048
          %317 = vsyncadd %s310, %s316
          %s318 = smul.addr %s314, 2
          %s319 = sadd.s32 %s30, %s318
          %s320 = smul.addr %s319, 128
          %s321 = scalar_lea.hbm %s2, %s320
          %s322 = sshll.u32 %s313, 4
          %s323 = int_to_ptr.vmem [resolvable:$true] %s322
          %328 = dma.hbm_to_vmem [thread:$0]  %s321, 2048, %s323, %s310, 256, 128, 8
        $region28: #{tpu_custom_call.1} parent=15 // pred_fallthru
          _
        // Predicated region
        $region29: #{tpu_custom_call.1} parent=15 // pred_check
          %p329 = pneg %p136
        $region30: #{tpu_custom_call.1} parent=15 // pred_check_branch
          %331 = sbr.rel (%p329) target = $region32
        $region31: #{tpu_custom_call.1} parent=15 // pred_region
          %p332 = scmp.lt.s32.totalorder %s29, 1
          %s333 = scalar_select %p332, %s29, 1
          %s334 = scalar_lea.vmem %s3, %s333
        $region32: #{tpu_custom_call.1} parent=15 // pred_fallthru
          _
        // Predicated region
        $region33: #{tpu_custom_call.1} parent=15 // pred_check
          %p335 = pneg %p162
        $region34: #{tpu_custom_call.1} parent=15 // pred_check_branch
          %337 = sbr.rel (%p335) target = $region36
        $region35: #{tpu_custom_call.1} parent=15 // pred_region
          %p338 = scmp.lt.s32.totalorder %s29, 1
          %s339 = scalar_select %p338, %s29, 1
          %s340 = scalar_lea.vmem %s4, %s339
        $region36: #{tpu_custom_call.1} parent=15 // pred_fallthru
          _
        // Predicated region
        $region37: #{tpu_custom_call.1} parent=15 // pred_check
          %p341 = pneg %p188
        $region38: #{tpu_custom_call.1} parent=15 // pred_check_branch
          %343 = sbr.rel (%p341) target = $region40
        $region39: #{tpu_custom_call.1} parent=15 // pred_region
          %p344 = scmp.lt.s32.totalorder %s30, 1
          %s345 = scalar_select %p344, %s30, 1
          %s346 = scalar_lea.vmem %s5, %s345
        $region40: #{tpu_custom_call.1} parent=15 // pred_fallthru
          _
        // Predicated region
        $region41: #{tpu_custom_call.1} parent=15 // pred_check
          %p347 = pneg %p214
        $region42: #{tpu_custom_call.1} parent=15 // pred_check_branch
          %349 = sbr.rel (%p347) target = $region44
        $region43: #{tpu_custom_call.1} parent=15 // pred_region
          %p350 = scmp.lt.s32.totalorder %s29, 1
          %s351 = scalar_select %p350, %s29, 1
          %s352 = scalar_lea.vmem %s6, %s351
        $region44: #{tpu_custom_call.1} parent=15 // pred_fallthru
          _
      $region16: #{tpu_custom_call.1} parent=5 // pred_fallthru
        _
      %p353 = scmp.le.s32.totalorder 1, %s22
      %p354 = scmp.lt.s32.totalorder %s22, 5
      %p355 = pnand %p353, %p354
      %p356 = pneg %p355
      // Predicated region
      $region45: #{tpu_custom_call.1} parent=5 // pred_check
        _
      $region46: #{tpu_custom_call.1} parent=5 // pred_check_branch
        %358 = sbr.rel (%p355) target = $region48
      $region47: #{tpu_custom_call.1} parent=5 // pred_region
        %s359 = ssub.s32 %s22, 1
        %s360 = sand.u32 %s47, 1
        %s361 = scalar_lea.sflag [#allocation5], %s360
        %s362 = sand.u32 %s47, 1
        %s363 = smul.addr %s362, 8
        %s364 = scalar_lea.vmem [#allocation4], %s363
        // Predicated region
        $region49: #{tpu_custom_call.1} parent=47 // pred_check
          %p365 = pneg %p60
        $region50: #{tpu_custom_call.1} parent=47 // pred_check_branch
          %367 = sbr.rel (%p365) target = $region52
        $region51: #{tpu_custom_call.1} parent=47 // pred_region
          %368 = dma.done %s361, 128
        $region52: #{tpu_custom_call.1} parent=47 // pred_fallthru
          _
        %s369 = sand.u32 %s27, 1
        %s370 = scalar_lea.sflag [#allocation8], %s369
        %s371 = sand.u32 %s75, 1
        %s372 = smul.addr %s371, 128
        %s373 = scalar_lea.vmem [#allocation7], %s372
        // Predicated region
        $region53: #{tpu_custom_call.1} parent=47 // pred_check
          %p374 = pneg %p88
        $region54: #{tpu_custom_call.1} parent=47 // pred_check_branch
          %376 = sbr.rel (%p374) target = $region56
        $region55: #{tpu_custom_call.1} parent=47 // pred_region
          %377 = dma.done %s370, 2048
        $region56: #{tpu_custom_call.1} parent=47 // pred_fallthru
          _
        %s378 = sand.u32 %s27, 1
        %s379 = scalar_lea.sflag [#allocation8], %s378
        %s380 = sand.u32 %s103, 1
        %s381 = smul.addr %s380, 128
        %s382 = scalar_lea.vmem [#allocation9], %s381
        // Predicated region
        $region57: #{tpu_custom_call.1} parent=47 // pred_check
          %p383 = pneg %p116
        $region58: #{tpu_custom_call.1} parent=47 // pred_check_branch
          %385 = sbr.rel (%p383) target = $region60
        $region59: #{tpu_custom_call.1} parent=47 // pred_region
          %386 = dma.done %s379, 2048
        $region60: #{tpu_custom_call.1} parent=47 // pred_fallthru
          _
        %s387 = sand.u32 %s47, 1
        %s388 = scalar_lea.sflag [#allocation5], %s387
        %s389 = sand.u32 %s47, 1
        %s390 = smul.addr %s389, 8
        %s391 = scalar_lea.vmem [#allocation4], %s390
        %p392 = pneg %p60
        %p393 = pneg %p57
        %s394 = sand.u32 %s27, 1
        %s395 = scalar_lea.sflag [#allocation8], %s394
        %s396 = sand.u32 %s75, 1
        %s397 = smul.addr %s396, 128
        %s398 = scalar_lea.vmem [#allocation7], %s397
        %p399 = pneg %p88
        %p400 = pneg %p85
        %s401 = sand.u32 %s27, 1
        %s402 = scalar_lea.sflag [#allocation8], %s401
        %s403 = sand.u32 %s103, 1
        %s404 = smul.addr %s403, 128
        %s405 = scalar_lea.vmem [#allocation9], %s404
        %p406 = pneg %p116
        %p407 = pneg %p113
        %p408 = scmp.lt.s32.totalorder %s31, 1
        %s409 = scalar_select %p408, %s31, 1
        %s410 = scalar_lea.vmem %s3, %s409
        %p411 = pneg %p142
        %p412 = pneg %p139
        %p413 = scmp.lt.s32.totalorder %s31, 1
        %s414 = scalar_select %p413, %s31, 1
        %s415 = scalar_lea.vmem %s4, %s414
        %p416 = pneg %p168
        %p417 = pneg %p165
        %p418 = scmp.lt.s32.totalorder %s32, 1
        %s419 = scalar_select %p418, %s32, 1
        %s420 = scalar_lea.vmem %s5, %s419
        %p421 = pneg %p194
        %p422 = pneg %p191
        %p423 = scmp.lt.s32.totalorder %s31, 1
        %s424 = scalar_select %p423, %s31, 1
        %s425 = scalar_lea.vmem %s6, %s424
        %p426 = pneg %p220
        %p427 = pneg %p217
        %p428 = pneg %p246
        %p429 = pneg %p243
        %s430 = sand.u32 %s233, 1
        %s431 = scalar_lea.sflag [#allocation6], %s430
        %s432 = sand.u32 %s233, 1
        %s433 = smul.addr %s432, 8
        %s434 = scalar_lea.vmem [#allocation10], %s433
        %s435 = smul.u32 16, %s31
        %s436 = smul.u32 16, %s31
        %p437 = scmp.lt.s32.totalorder %s31, 1
        %s438 = scalar_select %p437, %s31, 1
        %s439 = scalar_lea.vmem %s3, %s438
        %p440 = scmp.lt.s32.totalorder %s31, 1
        %s441 = scalar_select %p440, %s31, 1
        %s442 = scalar_lea.vmem %s4, %s441
        %p443 = scmp.lt.s32.totalorder %s32, 1
        %s444 = scalar_select %p443, %s32, 1
        %s445 = scalar_lea.vmem %s5, %s444
        %p446 = scmp.lt.s32.totalorder %s31, 1
        %s447 = scalar_select %p446, %s31, 1
        %s448 = scalar_lea.vmem %s6, %s447
        %p449 = scmp.eq.s32.totalorder %s32, 0
        // Predicated region
        $region61: #{tpu_custom_call.1} parent=47 // pred_check
          %p450 = pneg %p449
        $region62: #{tpu_custom_call.1} parent=47 // pred_check_branch
          %452 = sbr.rel (%p450) target = $region64
        $region63: #{tpu_custom_call.1} parent=47 // pred_region
          %453 = vst [vmem:[#allocation2] sm:$0xff] 0.0
          %454 = vst [vmem:[#allocation3] sm:$0xff] 0.0
        $region64: #{tpu_custom_call.1} parent=47 // pred_fallthru
          _
        %v455 = vld [vmem:[%s364] sm:$0xff]
        %v456 = vld [vmem:[%s445] sm:$0x1]
        %v457 = vld [vmem:[#allocation2] sm:$0xff]
        %v458 = vld [vmem:[%s373] sm:$0xff]
        %v459 = vld [vmem:[%s373 + $0x8] sm:$0xff]
        %v460 = vld [vmem:[%s373 + $0x10] sm:$0xff]
        %v461 = vld [vmem:[%s373 + $0x18] sm:$0xff]
        %v462 = vld [vmem:[%s373 + $0x20] sm:$0xff]
        %v463 = vld [vmem:[%s373 + $0x28] sm:$0xff]
        %v464 = vld [vmem:[%s373 + $0x30] sm:$0xff]
        %v465 = vld [vmem:[%s373 + $0x38] sm:$0xff]
        %v466 = vld [vmem:[%s373 + $0x40] sm:$0xff]
        %v467 = vld [vmem:[%s373 + $0x48] sm:$0xff]
        %v468 = vld [vmem:[%s373 + $0x50] sm:$0xff]
        %v469 = vld [vmem:[%s373 + $0x58] sm:$0xff]
        %v470 = vld [vmem:[%s373 + $0x60] sm:$0xff]
        %v471 = vld [vmem:[%s373 + $0x68] sm:$0xff]
        %v472 = vld [vmem:[%s373 + $0x70] sm:$0xff]
        %v473 = vld [vmem:[%s373 + $0x78] sm:$0xff]
        %474 = vmatprep.subr.mxu0 0.0
        %475 = vmatpush1.xpose.msra.mxu0 %v473
        %476 = vmatprep.subr.mxu0 0.0
        %477 = vmatpush1.xpose.msra.mxu0 %v472
        %478 = vmatprep.subr.mxu0 0.0
        %479 = vmatpush1.xpose.msra.mxu0 %v471
        %480 = vmatprep.subr.mxu0 0.0
        %481 = vmatpush1.xpose.msra.mxu0 %v470
        %482 = vmatprep.subr.mxu0 0.0
        %483 = vmatpush1.xpose.msra.mxu0 %v469
        %484 = vmatprep.subr.mxu0 0.0
        %485 = vmatpush1.xpose.msra.mxu0 %v468
        %486 = vmatprep.subr.mxu0 0.0
        %487 = vmatpush1.xpose.msra.mxu0 %v467
        %488 = vmatprep.subr.mxu0 0.0
        %489 = vmatpush1.xpose.msra.mxu0 %v466
        %490 = vmatprep.subr.mxu0 0.0
        %491 = vmatpush1.xpose.msra.mxu0 %v465
        %492 = vmatprep.subr.mxu0 0.0
        %493 = vmatpush1.xpose.msra.mxu0 %v464
        %494 = vmatprep.subr.mxu0 0.0
        %495 = vmatpush1.xpose.msra.mxu0 %v463
        %496 = vmatprep.subr.mxu0 0.0
        %497 = vmatpush1.xpose.msra.mxu0 %v462
        %498 = vmatprep.subr.mxu0 0.0
        %499 = vmatpush1.xpose.msra.mxu0 %v461
        %500 = vmatprep.subr.mxu0 0.0
        %501 = vmatpush1.xpose.msra.mxu0 %v460
        %502 = vmatprep.subr.mxu0 0.0
        %503 = vmatpush1.xpose.msra.mxu0 %v459
        %504 = vmatprep.subr.mxu0 0.0
        %505 = vmatpush1.xpose.msra.mxu0 %v458
        %506 = vmatprep.subr.mxu0 0.0
        %507 = vmatpush2.xpose.msra.mxu0 0.0
        %508 = vmatprep.subr.mxu0 0.0
        %509 = vmatpush2.xpose.msra.mxu0 0.0
        %510 = vmatprep.subr.mxu0 0.0
        %511 = vmatpush2.xpose.msra.mxu0 0.0
        %512 = vmatprep.subr.mxu0 0.0
        %513 = vmatpush2.xpose.msra.mxu0 0.0
        %514 = vmatprep.subr.mxu0 0.0
        %515 = vmatpush2.xpose.msra.mxu0 0.0
        %516 = vmatprep.subr.mxu0 0.0
        %517 = vmatpush2.xpose.msra.mxu0 0.0
        %518 = vmatprep.subr.mxu0 0.0
        %519 = vmatpush2.xpose.msra.mxu0 0.0
        %520 = vmatprep.subr.mxu0 0.0
        %521 = vmatpush2.xpose.msra.mxu0 0.0
        %522 = vmatprep.subr.mxu0 0.0
        %523 = vmatpush2.xpose.msra.mxu0 0.0
        %524 = vmatprep.subr.mxu0 0.0
        %525 = vmatpush2.xpose.msra.mxu0 0.0
        %526 = vmatprep.subr.mxu0 0.0
        %527 = vmatpush2.xpose.msra.mxu0 0.0
        %528 = vmatprep.subr.mxu0 0.0
        %529 = vmatpush2.xpose.msra.mxu0 0.0
        %530 = vmatprep.subr.mxu0 0.0
        %531 = vmatpush2.xpose.msra.mxu0 0.0
        %532 = vmatprep.subr.mxu0 0.0
        %533 = vmatpush2.xpose.msra.mxu0 0.0
        %534 = vmatprep.subr.mxu0 0.0
        %535 = vmatpush2.xpose.msra.mxu0 0.0
        %536 = vmatprep.subr.mxu0 0.0
        %537 = vmatpush2.xpose.msra.mxu0 0.0
        %538 = vmatprep.mubr.f32.mxu0 0.0
        %539 = vmatmul.mubr.f32.gmra.mxu0 %v455
        %v540 = vpop.f32.mrf.mxu0
        %v541 = vadd.f32 0.0, %v540
        %v542 = vpop.f32.mrf.mxu0
        %543 = vdwg.mxu0
        %v544 = vadd.f32 %v457, %v541
        %545 = vst [vmem:[#allocation2] sm:$0xff] %v544
        %v546 = vld [vmem:[#allocation3] sm:$0xff]
        %v548 = vlaneseq
        %v549 = vshrl.u32 %v548, 7
        %v550 = vsub.s32 0, %v549
        %v551 = vrot.slane %v456, %v550
        %v553 = vmul.f32 %v455, %v551
        %v554 = vld [vmem:[%s382] sm:$0xff]
        %v555 = vld [vmem:[%s382 + $0x8] sm:$0xff]
        %v556 = vld [vmem:[%s382 + $0x10] sm:$0xff]
        %v557 = vld [vmem:[%s382 + $0x18] sm:$0xff]
        %v558 = vld [vmem:[%s382 + $0x20] sm:$0xff]
        %v559 = vld [vmem:[%s382 + $0x28] sm:$0xff]
        %v560 = vld [vmem:[%s382 + $0x30] sm:$0xff]
        %v561 = vld [vmem:[%s382 + $0x38] sm:$0xff]
        %v562 = vld [vmem:[%s382 + $0x40] sm:$0xff]
        %v563 = vld [vmem:[%s382 + $0x48] sm:$0xff]
        %v564 = vld [vmem:[%s382 + $0x50] sm:$0xff]
        %v565 = vld [vmem:[%s382 + $0x58] sm:$0xff]
        %v566 = vld [vmem:[%s382 + $0x60] sm:$0xff]
        %v567 = vld [vmem:[%s382 + $0x68] sm:$0xff]
        %v568 = vld [vmem:[%s382 + $0x70] sm:$0xff]
        %v569 = vld [vmem:[%s382 + $0x78] sm:$0xff]
        %570 = vmatprep.subr.mxu0 0.0
        %571 = vmatpush1.xpose.msra.mxu0 %v569
        %572 = vmatprep.subr.mxu0 0.0
        %573 = vmatpush1.xpose.msra.mxu0 %v568
        %574 = vmatprep.subr.mxu0 0.0
        %575 = vmatpush1.xpose.msra.mxu0 %v567
        %576 = vmatprep.subr.mxu0 0.0
        %577 = vmatpush1.xpose.msra.mxu0 %v566
        %578 = vmatprep.subr.mxu0 0.0
        %579 = vmatpush1.xpose.msra.mxu0 %v565
        %580 = vmatprep.subr.mxu0 0.0
        %581 = vmatpush1.xpose.msra.mxu0 %v564
        %582 = vmatprep.subr.mxu0 0.0
        %583 = vmatpush1.xpose.msra.mxu0 %v563
        %584 = vmatprep.subr.mxu0 0.0
        %585 = vmatpush1.xpose.msra.mxu0 %v562
        %586 = vmatprep.subr.mxu0 0.0
        %587 = vmatpush1.xpose.msra.mxu0 %v561
        %588 = vmatprep.subr.mxu0 0.0
        %589 = vmatpush1.xpose.msra.mxu0 %v560
        %590 = vmatprep.subr.mxu0 0.0
        %591 = vmatpush1.xpose.msra.mxu0 %v559
        %592 = vmatprep.subr.mxu0 0.0
        %593 = vmatpush1.xpose.msra.mxu0 %v558
        %594 = vmatprep.subr.mxu0 0.0
        %595 = vmatpush1.xpose.msra.mxu0 %v557
        %596 = vmatprep.subr.mxu0 0.0
        %597 = vmatpush1.xpose.msra.mxu0 %v556
        %598 = vmatprep.subr.mxu0 0.0
        %599 = vmatpush1.xpose.msra.mxu0 %v555
        %600 = vmatprep.subr.mxu0 0.0
        %601 = vmatpush1.xpose.msra.mxu0 %v554
        %602 = vmatprep.subr.mxu0 0.0
        %603 = vmatpush2.xpose.msra.mxu0 0.0
        %604 = vmatprep.subr.mxu0 0.0
        %605 = vmatpush2.xpose.msra.mxu0 0.0
        %606 = vmatprep.subr.mxu0 0.0
        %607 = vmatpush2.xpose.msra.mxu0 0.0
        %608 = vmatprep.subr.mxu0 0.0
        %609 = vmatpush2.xpose.msra.mxu0 0.0
        %610 = vmatprep.subr.mxu0 0.0
        %611 = vmatpush2.xpose.msra.mxu0 0.0
        %612 = vmatprep.subr.mxu0 0.0
        %613 = vmatpush2.xpose.msra.mxu0 0.0
        %614 = vmatprep.subr.mxu0 0.0
        %615 = vmatpush2.xpose.msra.mxu0 0.0
        %616 = vmatprep.subr.mxu0 0.0
        %617 = vmatpush2.xpose.msra.mxu0 0.0
        %618 = vmatprep.subr.mxu0 0.0
        %619 = vmatpush2.xpose.msra.mxu0 0.0
        %620 = vmatprep.subr.mxu0 0.0
        %621 = vmatpush2.xpose.msra.mxu0 0.0
        %622 = vmatprep.subr.mxu0 0.0
        %623 = vmatpush2.xpose.msra.mxu0 0.0
        %624 = vmatprep.subr.mxu0 0.0
        %625 = vmatpush2.xpose.msra.mxu0 0.0
        %626 = vmatprep.subr.mxu0 0.0
        %627 = vmatpush2.xpose.msra.mxu0 0.0
        %628 = vmatprep.subr.mxu0 0.0
        %629 = vmatpush2.xpose.msra.mxu0 0.0
        %630 = vmatprep.subr.mxu0 0.0
        %631 = vmatpush2.xpose.msra.mxu0 0.0
        %632 = vmatprep.subr.mxu0 0.0
        %633 = vmatpush2.xpose.msra.mxu0 0.0
        %634 = vmatprep.mubr.f32.mxu0 0.0
        %635 = vmatmul.mubr.f32.gmra.mxu0 %v553
        %v636 = vpop.f32.mrf.mxu0
        %v637 = vadd.f32 0.0, %v636
        %v638 = vpop.f32.mrf.mxu0
        %639 = vdwg.mxu0
        %v640 = vadd.f32 %v546, %v637
        %641 = vst [vmem:[#allocation3] sm:$0xff] %v640
        %p642 = scmp.eq.s32.totalorder %s32, 1
        // Predicated region
        $region65: #{tpu_custom_call.1} parent=47 // pred_check
          %p643 = pneg %p642
        $region66: #{tpu_custom_call.1} parent=47 // pred_check_branch
          %645 = sbr.rel (%p643) target = $region68
        $region67: #{tpu_custom_call.1} parent=47 // pred_region
          %v646 = vld [vmem:[%s448] sm:$0x1]
          %v647 = vld [vmem:[%s439] sm:$0x1]
          %v648 = vld [vmem:[%s442] sm:$0x1]
          %v649 = vmul.f32 %v648, %v646
          %v650 = vadd.f32 %v647, %v649
          %v651 = vld [vmem:[#allocation2] sm:$0xff]
          %v652 = vld [vmem:[#allocation3] sm:$0xff]
          %v654 = vlaneseq
          %v655 = vshrl.u32 %v654, 7
          %v656 = vsub.s32 0, %v655
          %v657 = vrot.slane %v646, %v656
          %v659 = vmul.f32 %v652, %v657
          %v660 = vadd.f32 %v651, %v659
          %v662 = vlaneseq
          %v663 = vshrl.u32 %v662, 7
          %v664 = vsub.s32 0, %v663
          %v665 = vrot.slane %v650, %v664
          %v667 = vadd.f32 %v660, %v665
          %668 = vst [vmem:[%s434] sm:$0xff] %v667
        $region68: #{tpu_custom_call.1} parent=47 // pred_fallthru
          _
        %s669 = sand.u32 %s233, 1
        %s670 = scalar_lea.sflag [#allocation6], %s669
        %s671 = sand.u32 %s233, 1
        %s672 = smul.addr %s671, 8
        %s673 = scalar_lea.vmem [#allocation10], %s672
        // Predicated region
        $region69: #{tpu_custom_call.1} parent=47 // pred_check
          %p674 = pneg %p243
        $region70: #{tpu_custom_call.1} parent=47 // pred_check_branch
          %676 = sbr.rel (%p674) target = $region72
        $region71: #{tpu_custom_call.1} parent=47 // pred_region
          %s678 = ssub.s32 128, 128
          %679 = vsyncadd %s670, %s678
          %s680 = smul.addr %s31, 128
          %s681 = scalar_lea.hbm %s7, %s680
          %s683 = sshll.u32 %s673, 4
          %s684 = int_to_ptr.vmem [resolvable:$true] %s683
          %686 = dma.vmem_to_hbm [thread:$0]  %s684, 128, %s681, %s670
        $region72: #{tpu_custom_call.1} parent=47 // pred_fallthru
          _
      $region48: #{tpu_custom_call.1} parent=5 // pred_fallthru
        _
      %p687 = scmp.le.s32.totalorder 2, %s22
      // Predicated region
      $region73: #{tpu_custom_call.1} parent=5 // pred_check
        %p688 = pneg %p687
      $region74: #{tpu_custom_call.1} parent=5 // pred_check_branch
        %690 = sbr.rel (%p688) target = $region76
      $region75: #{tpu_custom_call.1} parent=5 // pred_region
        %s691 = ssub.s32 %s22, 2
        // Predicated region
        $region77: #{tpu_custom_call.1} parent=75 // pred_check
          %p692 = pneg %p249
        $region78: #{tpu_custom_call.1} parent=75 // pred_check_branch
          %694 = sbr.rel (%p692) target = $region80
        $region79: #{tpu_custom_call.1} parent=75 // pred_region
          %s695 = sand.u32 %s234, 1
          %s696 = scalar_lea.sflag [#allocation6], %s695
          %s697 = sand.u32 %s234, 1
          %s698 = smul.addr %s697, 8
          %s699 = scalar_lea.vmem [#allocation10], %s698
          %700 = dma.done %s696, 128
        $region80: #{tpu_custom_call.1} parent=75 // pred_fallthru
          _
      $region76: #{tpu_custom_call.1} parent=5 // pred_fallthru
        _
    $region6: #{tpu_custom_call.1} parent=1 // loop_footer
      %s26 = sadd.s32 1, %s22
    $region7: #{tpu_custom_call.1} parent=1 // loop_footer_branch
      %21 = sbr.rel target = $region3
    $region8: #{tpu_custom_call.1} parent=1 // loop_exit
      _
    %701 = vsyncpa [#allocation5], 1
    %s702 = scalar_lea.sflag [#allocation5], 1
    %703 = vsyncpa %s702, 1
    %704 = vsyncpa [#allocation8], 1
    %s705 = scalar_lea.sflag [#allocation8], 1
    %706 = vsyncpa %s705, 1
    %707 = vsyncpa [#allocation6], 1
    %s708 = scalar_lea.sflag [#allocation6], 1
    %709 = vsyncpa %s708, 1

</llo_original>
